<compile_context>
chip_gen: v6e
topology: v6e:2x2x1
jax: 0.10.0
libtpu: 0.0.40
codegen_flags: <defaults>
</compile_context>

<pallas_src>
import functools
import numpy as np
import jax
import jax.numpy as jnp
from jax import lax
from jax.experimental import pallas as pl
from jax.experimental.pallas import tpu as pltpu

_VMEM_LIMIT = 32 * 1024 * 1024   # modest cap: fine on v7x (64 MiB) and v5e/v6e
_CJ = 16                         # j-chunk (sublanes) inside the pairwise kernel


def _round_up(x, m):
    return ((x + m - 1) // m) * m


# ---------------------------------------------------------------------------
# Kernel 1: per-point voxel id, lane-wide (O(N)).  Invalid / padding points
# get vid = -1 (never equal to any valid id >= 0).
# ---------------------------------------------------------------------------
def _prep_call(ptsT, voxel_size, pc_range, grid_size, lt):
    D, n_pad = ptsT.shape
    inv_vx, inv_vy, inv_vz = (float(1.0 / v) for v in voxel_size)
    xmin, ymin, zmin = (float(v) for v in pc_range[:3])
    gx, gy, gz = (int(g) for g in grid_size)

    def kernel(pts_ref, vid_ref):
        x = pts_ref[0:1, :]
        y = pts_ref[1:2, :]
        z = pts_ref[2:3, :]
        # reciprocal multiplies (no divisions) in the per-point hot path
        cx = jnp.floor((x - xmin) * inv_vx).astype(jnp.int32)
        cy = jnp.floor((y - ymin) * inv_vy).astype(jnp.int32)
        cz = jnp.floor((z - zmin) * inv_vz).astype(jnp.int32)
        valid = ((cx >= 0) & (cx < gx) & (cy >= 0) & (cy < gy) &
                 (cz >= 0) & (cz < gz))
        vid_ref[...] = jnp.where(valid, cz * (gy * gx) + cy * gx + cx,
                                 jnp.int32(-1))

    return pl.pallas_call(
        kernel,
        out_shape=jax.ShapeDtypeStruct((1, n_pad), jnp.int32),
        grid=(n_pad // lt,),
        in_specs=[pl.BlockSpec((D, lt), lambda n: (0, n))],
        out_specs=pl.BlockSpec((1, lt), lambda n: (0, n)),
        compiler_params=pltpu.CompilerParams(
            dimension_semantics=("parallel",)),
    )(ptsT)


# ---------------------------------------------------------------------------
# Kernel 2: O(N^2) pairwise phase, triangular.
#   first[i] = index of first point sharing i's voxel (always <= i),
#   pos[i]   = number of earlier points in the same voxel.
# Grid is 1-D over i tiles ("parallel"); the j reduction is an in-kernel loop
# over 16-sublane chunks of the VMEM-resident vid column, bounded by the i
# tile end (exact triangular work).
# ---------------------------------------------------------------------------
def _pairwise_call(vid_row, vid_col, lt, cj):
    n_pad = vid_row.shape[1]
    nblk = n_pad // lt
    chunks_per_blk = lt // cj

    def kernel(vidi_ref, vidcol_ref, first_ref, pos_ref):
        i_blk = pl.program_id(0)
        vid_i = vidi_ref[...]                                       # (1, lt)
        i_idx = lax.broadcasted_iota(jnp.int32, (1, lt), 1) + i_blk * lt
        first_ref[...] = jnp.full((1, lt), n_pad, jnp.int32)
        pos_ref[...] = jnp.zeros((1, lt), jnp.int32)
        # triangular bound: only j <= last i of this tile can contribute
        n_chunks = (i_blk + 1) * chunks_per_blk

        def body(c, carry):
            j0 = pl.multiple_of(c * cj, cj)
            vid_j = vidcol_ref[pl.ds(j0, cj), :]                    # (cj, 1)
            j_idx = lax.broadcasted_iota(jnp.int32, (cj, lt), 0) + c * cj
            eq = vid_j == vid_i                                     # (cj, lt)
            first_here = jnp.min(jnp.where(eq, j_idx, n_pad),
                                 axis=0, keepdims=True)
            first_ref[...] = jnp.minimum(first_ref[...], first_here)
            pos_here = jnp.sum(jnp.where(eq & (j_idx < i_idx), 1, 0),
                               axis=0, keepdims=True)
            pos_ref[...] = pos_ref[...] + pos_here
            return carry

        lax.fori_loop(0, n_chunks, body, 0)

    return pl.pallas_call(
        kernel,
        out_shape=(jax.ShapeDtypeStruct((1, n_pad), jnp.int32),
                   jax.ShapeDtypeStruct((1, n_pad), jnp.int32)),
        grid=(nblk,),
        in_specs=[pl.BlockSpec((1, lt), lambda i: (0, i)),      # i tile
                  pl.BlockSpec((n_pad, 1), lambda i: (0, 0))],  # resident vid col
        out_specs=(pl.BlockSpec((1, lt), lambda i: (0, i)),
                   pl.BlockSpec((1, lt), lambda i: (0, i))),
        compiler_params=pltpu.CompilerParams(
            dimension_semantics=("parallel",),
            vmem_limit_bytes=_VMEM_LIMIT),
    )(vid_row, vid_col)


# ---------------------------------------------------------------------------
# Kernel 3: O(R) row gather.
#   out[r, :] = src[inv[r], :] if inv[r] < n_src else 0
# inv is scalar-prefetched into SMEM; src is VMEM-resident; grid is over
# output-row tiles ("parallel").
# ---------------------------------------------------------------------------
def _gather_rows_call(inv, src_rows, tr):
    n_src, D = src_rows.shape
    r_pad = inv.shape[0]

    def kernel(inv_ref, src_ref, out_ref):
        r0 = pl.program_id(0) * tr

        def body(r, carry):
            p = inv_ref[r0 + r]
            ok = p < n_src
            psafe = jnp.where(ok, p, 0)
            row = src_ref[pl.ds(psafe, 1), :]                   # (1, D)
            out_ref[pl.ds(r, 1), :] = jnp.where(ok, row, 0.0)
            return carry

        lax.fori_loop(0, tr, body, 0)

    return pl.pallas_call(
        kernel,
        out_shape=jax.ShapeDtypeStruct((r_pad, D), jnp.float32),
        grid_spec=pltpu.PrefetchScalarGridSpec(
            num_scalar_prefetch=1,
            grid=(r_pad // tr,),
            in_specs=[pl.BlockSpec((n_src, D), lambda r, inv: (0, 0))],
            out_specs=pl.BlockSpec((tr, D), lambda r, inv: (r, 0))),
        compiler_params=pltpu.CompilerParams(
            dimension_semantics=("parallel",),
            vmem_limit_bytes=_VMEM_LIMIT),
    )(inv, src_rows)


# ---------------------------------------------------------------------------
# Fixed-shape (padded) forward: everything stays on device, no host sync.
# ---------------------------------------------------------------------------
@functools.partial(
    jax.jit,
    static_argnames=("voxel_size", "pc_range", "max_points", "max_voxels"))
def voxelization_forward_padded(points, *, voxel_size, pc_range, max_points,
                                max_voxels):
    """Returns voxels (V, P, D) f32, coors (V, 3) int32 in [x, y, z] order,
    num_points (V,) int32 and voxel_num () int32 — all padded / device-side."""
    points = points.astype(jnp.float32)
    N, D = points.shape
    V, P = int(max_voxels), int(max_points)
    vs = tuple(float(v) for v in voxel_size)
    rng = tuple(float(v) for v in pc_range)
    grid_size = tuple(int(round((rng[3 + i] - rng[i]) / vs[i])) for i in range(3))
    gx, gy, gz = grid_size
    assert gx * gy * gz < 2 ** 31, "voxel id would overflow int32"

    # pad point count to a lane-tile multiple; padding points sit far outside
    # the point-cloud range so they are classified invalid and dropped.
    n0 = max(128, _round_up(N, 128))
    lt = min(512, n0)                        # i / lane tile for kernels 1 & 2
    n_pad = _round_up(n0, lt)
    sentinel = jnp.asarray([rng[0] - 1e4, rng[1] - 1e4, rng[2] - 1e4]
                           + [0.0] * (D - 3), jnp.float32)
    pad = jnp.broadcast_to(sentinel, (n_pad - N, D))
    pts = jnp.concatenate([points, pad], axis=0)              # (n_pad, D)
    ptsT = pts.T                                              # (D, n_pad)

    # kernel 1: per-point voxel id (single lane-wide pass)
    vid_row = _prep_call(ptsT, vs, rng, grid_size, lt)        # (1, n_pad)
    vid_col = vid_row.reshape(n_pad, 1)                       # resident column

    # kernel 2: triangular pairwise first-occurrence / in-voxel position
    first_row, pos_row = _pairwise_call(vid_row, vid_col, lt, _CJ)

    # ---- O(N) bookkeeping (prefix sum / gathers / scatters) in plain JAX ----
    vid = vid_row[0]
    first = first_row[0]
    pos = pos_row[0]
    valid = vid >= 0
    idx = jnp.arange(n_pad, dtype=jnp.int32)
    is_first = valid & (first == idx)
    rank = jnp.cumsum(is_first.astype(jnp.int32))
    slot = jnp.take(rank, jnp.clip(first, 0, n_pad - 1)) - 1   # first-occ. order
    assigned = valid & (slot < V)
    keep = assigned & (pos < P)
    voxel_num = jnp.sum((is_first & (slot < V)).astype(jnp.int32))

    # inverse map: which point fills each output row (V*P rows); empty -> n_pad
    R = V * P
    tr = 128
    r_pad = _round_up(R, tr)
    row = jnp.where(keep, slot * P + pos, r_pad).astype(jnp.int32)
    point_of_row = jnp.full((r_pad,), n_pad, jnp.int32).at[row].set(
        idx, mode="drop")

    # kernel 3: O(R) gather of point rows into the padded voxel buffer
    vox_flat = _gather_rows_call(point_of_row, pts, tr)       # (r_pad, D)
    voxels = vox_flat[:R].reshape(V, P, D)

    # per-voxel counts (scatter-add) and coords (integer decomposition of the
    # voxel id of the voxel's first point) — O(N) / O(V), tiny.
    slot_a = jnp.where(assigned, slot, V).astype(jnp.int32)
    counts = jnp.zeros((V,), jnp.int32).at[slot_a].add(1, mode="drop")
    num_points = jnp.minimum(counts, P).astype(jnp.int32)

    slot_f = jnp.where(is_first & (slot < V), slot, V).astype(jnp.int32)
    first_pt = jnp.full((V,), n_pad, jnp.int32).at[slot_f].set(idx, mode="drop")
    vox_valid = first_pt < n_pad
    vox_vid = jnp.take(vid, jnp.clip(first_pt, 0, n_pad - 1))
    cx = vox_vid % gx
    cy = (vox_vid // gx) % gy
    cz = vox_vid // (gx * gy)
    coors_xyz = jnp.stack([cx, cy, cz], axis=1).astype(jnp.int32)
    coors_xyz = jnp.where(vox_valid[:, None], coors_xyz, 0)

    return voxels, coors_xyz, num_points, voxel_num


class PallasVoxelization:
    """Mirrors the PyTorch Voxelization module (forward only, deterministic)."""

    def __init__(self, voxel_size, point_cloud_range, max_num_points, max_voxels,
                 deterministic=True):
        self.voxel_size = tuple(float(v) for v in voxel_size)
        self.point_cloud_range = tuple(float(v) for v in point_cloud_range)
        self.max_num_points = int(max_num_points)
        mv = max_voxels if isinstance(max_voxels, (tuple, list)) else (max_voxels,
                                                                       max_voxels)
        self.max_voxels = (int(mv[0]), int(mv[1]))
        # TODO(synk): the non-deterministic CUDA variant relies on atomics and has
        # no TPU equivalent; only the deterministic path is implemented.
        self.deterministic = deterministic
        self.training = False

    def forward_padded(self, points):
        """Sync-free path: fixed-shape padded outputs + device-side voxel count."""
        mv = self.max_voxels[0] if self.training else self.max_voxels[1]
        return voxelization_forward_padded(
            points, voxel_size=self.voxel_size, pc_range=self.point_cloud_range,
            max_points=self.max_num_points, max_voxels=mv)

    def __call__(self, points):
        voxels, coors, num_points, voxel_num = self.forward_padded(points)
        # Torch-parity only: the dynamic voxels[:voxel_num] truncation needs one
        # host sync.  Jitted consumers should use forward_padded() and mask.
        n = int(jax.device_get(voxel_num))
        return voxels[:n], coors[:n], num_points[:n]


def _reference_voxelize(points, voxel_size, pc_range, max_points, max_voxels):
    """NumPy re-implementation of deterministic hard voxelization."""
    points = np.asarray(points, np.float32)
    inv = np.asarray([1.0 / float(v) for v in voxel_size], np.float32)
    rng = np.asarray(pc_range, np.float32)
    grid = np.asarray([int(round((float(pc_range[3 + i]) - float(pc_range[i]))
                                 / float(voxel_size[i]))) for i in range(3)],
                      np.int64)
    D = points.shape[1]
    voxels = np.zeros((max_voxels, max_points, D), np.float32)
    coors = np.zeros((max_voxels, 3), np.int32)
    num = np.zeros((max_voxels,), np.int32)
    table = {}
    voxel_num = 0
    for p in points:
        c = np.floor((p[:3] - rng[:3]) * inv).astype(np.int64)
        if np.any(c < 0) or np.any(c >= grid):
            continue
        key = (int(c[2]), int(c[1]), int(c[0]))   # stored as (z, y, x)
        if key not in table:
            if voxel_num >= max_voxels:
                continue
            table[key] = voxel_num
            coors[voxel_num] = np.array(key, np.int32)
            voxel_num += 1
        i = table[key]
        if num[i] < max_points:
            voxels[i, num[i]] = p
            num[i] += 1
    return voxels[:voxel_num], coors[:voxel_num, ::-1], num[:voxel_num]


if __name__ == "__main__":
    voxel_size = [0.25, 0.25, 8.0]
    point_cloud_range = [0.0, -2.0, -3.0, 4.0, 2.0, 5.0]   # 16 x 16 x 1 pillar grid
    max_num_points = 8
    max_voxels = (64, 64)

    layer = PallasVoxelization(voxel_size, point_cloud_range, max_num_points,
                               max_voxels)

    key = jax.random.PRNGKey(0)
    kx, ky, kz, kr = jax.random.split(key, 4)
    N = 200
    x = jax.random.uniform(kx, (N, 1), minval=-0.5, maxval=4.5)
    y = jax.random.uniform(ky, (N, 1), minval=-2.5, maxval=2.5)
    z = jax.random.uniform(kz, (N, 1), minval=-3.5, maxval=5.5)
    r = jax.random.uniform(kr, (N, 1))
    points = jnp.concatenate([x, y, z, r], axis=1).astype(jnp.float32)

    # sync-free fixed-shape path (count stays on device)
    vox_pad, coors_pad, num_pad, cnt = layer.forward_padded(points)
    jax.block_until_ready((vox_pad, coors_pad, num_pad, cnt))

    # torch-parity path (sliced outputs)
    voxels, coors, nppv = layer(points)
    jax.block_until_ready((voxels, coors, nppv))

    rv, rc, rn = _reference_voxelize(np.asarray(points), voxel_size,
                                     point_cloud_range, max_num_points,
                                     max_voxels[1])
    assert voxels.shape == rv.shape and coors.shape == rc.shape and nppv.shape == rn.shape
    np.testing.assert_array_equal(np.asarray(coors), rc)
    np.testing.assert_array_equal(np.asarray(nppv), rn)
    np.testing.assert_allclose(np.asarray(voxels), rv, rtol=0, atol=0)

    print("KERNEL_OK")
</pallas_src>

<mosaic_0001>
module attributes {stable_mosaic.version = 11 : i64} {
  func.func private @main(%arg0: i32) attributes {dimension_semantics = [#tpu.dimension_semantics<core_parallel>], iteration_bounds = array<i64: 2>, tpu.core_type = #tpu.core_type<sc_scalar_subcore>, window_params = []} {
    return
  }
}

module attributes {stable_mosaic.version = 11 : i64} {
  func.func private @main(%arg0: i32) attributes {dimension_semantics = [#tpu.dimension_semantics<core_parallel>], iteration_bounds = array<i64: 2>, tpu.core_type = #tpu.core_type<sc_scalar_subcore>, window_params = []} {
    return
  }
}

module attributes {stable_mosaic.version = 11 : i64} {
  func.func @kernel(%arg0: i32, %arg1: memref<4x256xf32, #tpu.memory_space<vmem>>, %arg2: memref<1x256xi32, #tpu.memory_space<vmem>>) attributes {dimension_semantics = [#tpu.dimension_semantics<parallel>], iteration_bounds = array<i64: 1>, scalar_prefetch = 0 : i64, scratch_operands = 0 : i64, tpu.core_type = #tpu.core_type<tc>, window_params = [{transform_indices = @transform_0, window_bounds = array<i64: 4, 256>}, {transform_indices = @transform_1, window_bounds = array<i64: 1, 256>}]} {
    %c0 = arith.constant 0 : index
    %c0_0 = arith.constant 0 : index
    %0 = vector.load %arg1[%c0, %c0_0] : memref<4x256xf32, #tpu.memory_space<vmem>>, vector<1x256xf32>
    %c1 = arith.constant 1 : index
    %c0_1 = arith.constant 0 : index
    %1 = vector.load %arg1[%c1, %c0_1] : memref<4x256xf32, #tpu.memory_space<vmem>>, vector<1x256xf32>
    %c2 = arith.constant 2 : index
    %c0_2 = arith.constant 0 : index
    %2 = vector.load %arg1[%c2, %c0_2] : memref<4x256xf32, #tpu.memory_space<vmem>>, vector<1x256xf32>
    %cst = arith.constant 0.000000e+00 : f32
    %3 = vector.broadcast %cst : f32 to vector<1x256xf32>
    %4 = arith.subf %0, %3 : vector<1x256xf32>
    %cst_3 = arith.constant 4.000000e+00 : f32
    %5 = vector.broadcast %cst_3 : f32 to vector<1x256xf32>
    %6 = arith.mulf %4, %5 : vector<1x256xf32>
    %7 = math.floor %6 : vector<1x256xf32>
    %8 = arith.fptosi %7 : vector<1x256xf32> to vector<1x256xi32>
    %cst_4 = arith.constant -2.000000e+00 : f32
    %9 = vector.broadcast %cst_4 : f32 to vector<1x256xf32>
    %10 = arith.subf %1, %9 : vector<1x256xf32>
    %cst_5 = arith.constant 4.000000e+00 : f32
    %11 = vector.broadcast %cst_5 : f32 to vector<1x256xf32>
    %12 = arith.mulf %10, %11 : vector<1x256xf32>
    %13 = math.floor %12 : vector<1x256xf32>
    %14 = arith.fptosi %13 : vector<1x256xf32> to vector<1x256xi32>
    %cst_6 = arith.constant -3.000000e+00 : f32
    %15 = vector.broadcast %cst_6 : f32 to vector<1x256xf32>
    %16 = arith.subf %2, %15 : vector<1x256xf32>
    %cst_7 = arith.constant 1.250000e-01 : f32
    %17 = vector.broadcast %cst_7 : f32 to vector<1x256xf32>
    %18 = arith.mulf %16, %17 : vector<1x256xf32>
    %19 = math.floor %18 : vector<1x256xf32>
    %20 = arith.fptosi %19 : vector<1x256xf32> to vector<1x256xi32>
    %c0_i32 = arith.constant 0 : i32
    %21 = vector.broadcast %c0_i32 : i32 to vector<1x256xi32>
    %22 = arith.cmpi sge, %8, %21 : vector<1x256xi32>
    %c16_i32 = arith.constant 16 : i32
    %23 = vector.broadcast %c16_i32 : i32 to vector<1x256xi32>
    %24 = arith.cmpi slt, %8, %23 : vector<1x256xi32>
    %25 = arith.andi %22, %24 : vector<1x256xi1>
    %c0_i32_8 = arith.constant 0 : i32
    %26 = vector.broadcast %c0_i32_8 : i32 to vector<1x256xi32>
    %27 = arith.cmpi sge, %14, %26 : vector<1x256xi32>
    %28 = arith.andi %25, %27 : vector<1x256xi1>
    %c16_i32_9 = arith.constant 16 : i32
    %29 = vector.broadcast %c16_i32_9 : i32 to vector<1x256xi32>
    %30 = arith.cmpi slt, %14, %29 : vector<1x256xi32>
    %31 = arith.andi %28, %30 : vector<1x256xi1>
    %c0_i32_10 = arith.constant 0 : i32
    %32 = vector.broadcast %c0_i32_10 : i32 to vector<1x256xi32>
    %33 = arith.cmpi sge, %20, %32 : vector<1x256xi32>
    %34 = arith.andi %31, %33 : vector<1x256xi1>
    %c1_i32 = arith.constant 1 : i32
    %35 = vector.broadcast %c1_i32 : i32 to vector<1x256xi32>
    %36 = arith.cmpi slt, %20, %35 : vector<1x256xi32>
    %37 = arith.andi %34, %36 : vector<1x256xi1>
    %c256_i32 = arith.constant 256 : i32
    %38 = vector.broadcast %c256_i32 : i32 to vector<1x256xi32>
    %39 = arith.muli %20, %38 : vector<1x256xi32>
    %c16_i32_11 = arith.constant 16 : i32
    %40 = vector.broadcast %c16_i32_11 : i32 to vector<1x256xi32>
    %41 = arith.muli %14, %40 : vector<1x256xi32>
    %42 = arith.addi %39, %41 : vector<1x256xi32>
    %43 = arith.addi %42, %8 : vector<1x256xi32>
    %c-1_i32 = arith.constant -1 : i32
    %44 = vector.broadcast %c-1_i32 : i32 to vector<1x256xi32>
    %45 = arith.select %37, %43, %44 : vector<1x256xi1>, vector<1x256xi32>
    %c0_12 = arith.constant 0 : index
    %c0_13 = arith.constant 0 : index
    %46 = vector.load %arg2[%c0_12, %c0_13] : memref<1x256xi32, #tpu.memory_space<vmem>>, vector<1x256xi32>
    tpu.vector_store %arg2[%c0_12, %c0_13], %45 {strides = array<i32>} : memref<1x256xi32, #tpu.memory_space<vmem>>, vector<1x256xi32>,
    return
  }
  func.func @transform_0(%arg0: i32) -> (i32, i32) {
    %c0_i32 = arith.constant 0 : i32
    %c0_i32_0 = arith.constant 0 : i32
    return %c0_i32, %arg0 : i32, i32
  }
  func.func @transform_1(%arg0: i32) -> (i32, i32) {
    %c0_i32 = arith.constant 0 : i32
    %c0_i32_0 = arith.constant 0 : i32
    return %c0_i32, %arg0 : i32, i32
  }
}

module attributes {stable_mosaic.version = 11 : i64} {
  func.func @kernel(%arg0: i32, %arg1: memref<1x256xi32, #tpu.memory_space<vmem>>, %arg2: memref<256x1xi32, #tpu.memory_space<vmem>>, %arg3: memref<1x256xi32, #tpu.memory_space<vmem>>, %arg4: memref<1x256xi32, #tpu.memory_space<vmem>>) attributes {dimension_semantics = [#tpu.dimension_semantics<parallel>], iteration_bounds = array<i64: 1>, scalar_prefetch = 0 : i64, scratch_operands = 0 : i64, tpu.core_type = #tpu.core_type<tc>, window_params = [{transform_indices = @transform_0, window_bounds = array<i64: 1, 256>}, {pipeline_mode = #tpu.pipeline_mode<synchronous>, transform_indices = @transform_1, window_bounds = array<i64: 256, 1>}, {transform_indices = @transform_2, window_bounds = array<i64: 1, 256>}, {transform_indices = @transform_3, window_bounds = array<i64: 1, 256>}]} {
    %c0 = arith.constant 0 : index
    %c0_0 = arith.constant 0 : index
    %0 = vector.load %arg1[%c0, %c0_0] : memref<1x256xi32, #tpu.memory_space<vmem>>, vector<1x256xi32>
    %1 = tpu.iota {dimensions = array<i32: 1>} : vector<1x256xi32>
    %c256_i32 = arith.constant 256 : i32
    %2 = arith.muli %arg0, %c256_i32 : i32
    %3 = vector.broadcast %2 : i32 to vector<1x256xi32>
    %4 = arith.addi %1, %3 : vector<1x256xi32>
    %c256_i32_1 = arith.constant 256 : i32
    %5 = vector.broadcast %c256_i32_1 : i32 to vector<1x256xi32>
    %c0_2 = arith.constant 0 : index
    %c0_3 = arith.constant 0 : index
    %6 = vector.load %arg3[%c0_2, %c0_3] : memref<1x256xi32, #tpu.memory_space<vmem>>, vector<1x256xi32>
    tpu.vector_store %arg3[%c0_2, %c0_3], %5 {strides = array<i32>} : memref<1x256xi32, #tpu.memory_space<vmem>>, vector<1x256xi32>,
    %c0_i32 = arith.constant 0 : i32
    %7 = vector.broadcast %c0_i32 : i32 to vector<1x256xi32>
    %c0_4 = arith.constant 0 : index
    %c0_5 = arith.constant 0 : index
    %8 = vector.load %arg4[%c0_4, %c0_5] : memref<1x256xi32, #tpu.memory_space<vmem>>, vector<1x256xi32>
    tpu.vector_store %arg4[%c0_4, %c0_5], %7 {strides = array<i32>} : memref<1x256xi32, #tpu.memory_space<vmem>>, vector<1x256xi32>,
    %c1_i32 = arith.constant 1 : i32
    %9 = arith.addi %arg0, %c1_i32 : i32
    %c16_i32 = arith.constant 16 : i32
    %10 = arith.muli %9, %c16_i32 : i32
    %c0_i32_6 = arith.constant 0 : i32
    %c0_i32_7 = arith.constant 0 : i32
    %11 = arith.subi %10, %c0_i32_7 : i32
    %12 = arith.addi %c0_i32_7, %11 : i32
    %c1_i32_8 = arith.constant 1 : i32
    scf.for %arg5 = %c0_i32_7 to %12 step %c1_i32_8  : i32 {
      %c16_i32_9 = arith.constant 16 : i32
      %13 = arith.muli %arg5, %c16_i32_9 : i32
      %14 = tpu.assume_multiple %13, 16 : i32
      %15 = arith.index_cast %14 : i32 to index
      %c0_10 = arith.constant 0 : index
      %16 = vector.load %arg2[%15, %c0_10] : memref<256x1xi32, #tpu.memory_space<vmem>>, vector<16x1xi32>
      %17 = tpu.iota {dimensions = array<i32: 0>} : vector<16x256xi32>
      %c16_i32_11 = arith.constant 16 : i32
      %18 = arith.muli %arg5, %c16_i32_11 : i32
      %19 = vector.broadcast %18 : i32 to vector<16x256xi32>
      %20 = arith.addi %17, %19 : vector<16x256xi32>
      %21 = vector.broadcast %16 : vector<16x1xi32> to vector<16x256xi32>
      %22 = vector.broadcast %0 : vector<1x256xi32> to vector<16x256xi32>
      %23 = arith.cmpi eq, %21, %22 : vector<16x256xi32>
      %c256_i32_12 = arith.constant 256 : i32
      %24 = vector.broadcast %c256_i32_12 : i32 to vector<16x256xi32>
      %25 = arith.select %23, %20, %24 : vector<16x256xi1>, vector<16x256xi32>
      %cst = arith.constant dense<2147483647> : vector<256xi32>
      %26 = vector.multi_reduction <minsi>, %25, %cst [0] : vector<16x256xi32> to vector<256xi32>
      %27 = vector.shape_cast %26 : vector<256xi32> to vector<1x256xi32>
      %c0_13 = arith.constant 0 : index
      %c0_14 = arith.constant 0 : index
      %28 = vector.load %arg3[%c0_13, %c0_14] : memref<1x256xi32, #tpu.memory_space<vmem>>, vector<1x256xi32>
      %29 = arith.minsi %28, %27 : vector<1x256xi32>
      %c0_15 = arith.constant 0 : index
      %c0_16 = arith.constant 0 : index
      %30 = vector.load %arg3[%c0_15, %c0_16] : memref<1x256xi32, #tpu.memory_space<vmem>>, vector<1x256xi32>
      tpu.vector_store %arg3[%c0_15, %c0_16], %29 {strides = array<i32>} : memref<1x256xi32, #tpu.memory_space<vmem>>, vector<1x256xi32>,
      %31 = vector.broadcast %4 : vector<1x256xi32> to vector<16x256xi32>
      %32 = arith.cmpi slt, %20, %31 : vector<16x256xi32>
      %33 = arith.andi %23, %32 : vector<16x256xi1>
      %c1_i32_17 = arith.constant 1 : i32
      %c0_i32_18 = arith.constant 0 : i32
      %34 = vector.broadcast %c1_i32_17 : i32 to vector<16x256xi32>
      %35 = vector.broadcast %c0_i32_18 : i32 to vector<16x256xi32>
      %36 = arith.select %33, %34, %35 : vector<16x256xi1>, vector<16x256xi32>
      %cst_19 = arith.constant dense<0> : vector<256xi32>
      %37 = vector.multi_reduction <add>, %36, %cst_19 [0] : vector<16x256xi32> to vector<256xi32>
      %38 = vector.shape_cast %37 : vector<256xi32> to vector<1x256xi32>
      %c0_20 = arith.constant 0 : index
      %c0_21 = arith.constant 0 : index
      %39 = vector.load %arg4[%c0_20, %c0_21] : memref<1x256xi32, #tpu.memory_space<vmem>>, vector<1x256xi32>
      %40 = arith.addi %39, %38 : vector<1x256xi32>
      %c0_22 = arith.constant 0 : index
      %c0_23 = arith.constant 0 : index
      %41 = vector.load %arg4[%c0_22, %c0_23] : memref<1x256xi32, #tpu.memory_space<vmem>>, vector<1x256xi32>
      tpu.vector_store %arg4[%c0_22, %c0_23], %40 {strides = array<i32>} : memref<1x256xi32, #tpu.memory_space<vmem>>, vector<1x256xi32>,
    }
    return
  }
  func.func @transform_0(%arg0: i32) -> (i32, i32) {
    %c0_i32 = arith.constant 0 : i32
    %c0_i32_0 = arith.constant 0 : i32
    return %c0_i32, %arg0 : i32, i32
  }
  func.func @transform_1(%arg0: i32) -> (i32, i32) {
    %c0_i32 = arith.constant 0 : i32
    %c0_i32_0 = arith.constant 0 : i32
    %c0_i32_1 = arith.constant 0 : i32
    return %c0_i32, %c0_i32_0 : i32, i32
  }
  func.func @transform_2(%arg0: i32) -> (i32, i32) {
    %c0_i32 = arith.constant 0 : i32
    %c0_i32_0 = arith.constant 0 : i32
    return %c0_i32, %arg0 : i32, i32
  }
  func.func @transform_3(%arg0: i32) -> (i32, i32) {
    %c0_i32 = arith.constant 0 : i32
    %c0_i32_0 = arith.constant 0 : i32
    return %c0_i32, %arg0 : i32, i32
  }
}

module attributes {stable_mosaic.version = 11 : i64} {
  func.func @kernel(%arg0: i32, %arg1: memref<512xi32, #tpu.memory_space<smem>>, %arg2: memref<256x4xf32, #tpu.memory_space<vmem>>, %arg3: memref<128x4xf32, #tpu.memory_space<vmem>>) attributes {dimension_semantics = [#tpu.dimension_semantics<parallel>], iteration_bounds = array<i64: 4>, scalar_prefetch = 1 : i64, scratch_operands = 0 : i64, tpu.core_type = #tpu.core_type<tc>, window_params = [{pipeline_mode = #tpu.pipeline_mode<synchronous>, transform_indices = @transform_0, window_bounds = array<i64: 256, 4>}, {transform_indices = @transform_1, window_bounds = array<i64: 128, 4>}]} {
    %c128_i32 = arith.constant 128 : i32
    %0 = arith.muli %arg0, %c128_i32 : i32
    %c0_i32 = arith.constant 0 : i32
    %c128_i32_0 = arith.constant 128 : i32
    %1 = arith.addi %c0_i32, %c128_i32_0 : i32
    %c1_i32 = arith.constant 1 : i32
    scf.for %arg4 = %c0_i32 to %1 step %c1_i32  : i32 {
      %2 = arith.addi %0, %arg4 : i32
      %3 = arith.index_cast %2 : i32 to index
      %4 = memref.load %arg1[%3] : memref<512xi32, #tpu.memory_space<smem>>
      %c256_i32 = arith.constant 256 : i32
      %5 = arith.cmpi slt, %4, %c256_i32 : i32
      %c0_i32_2 = arith.constant 0 : i32
      %6 = arith.select %5, %4, %c0_i32_2 : i32
      %7 = arith.index_cast %6 : i32 to index
      %c0 = arith.constant 0 : index
      %8 = vector.load %arg2[%7, %c0] : memref<256x4xf32, #tpu.memory_space<vmem>>, vector<1x4xf32>
      %cst = arith.constant 0.000000e+00 : f32
      %9 = vector.broadcast %cst : f32 to vector<1x4xf32>
      %10 = arith.select %5, %8, %9 : vector<1x4xf32>
      %11 = arith.index_cast %arg4 : i32 to index
      %c0_3 = arith.constant 0 : index
      %12 = vector.load %arg3[%11, %c0_3] : memref<128x4xf32, #tpu.memory_space<vmem>>, vector<1x4xf32>
      tpu.vector_store %arg3[%11, %c0_3], %10 {strides = array<i32>} : memref<128x4xf32, #tpu.memory_space<vmem>>, vector<1x4xf32>,
    }
    %c128_i32_1 = arith.constant 128 : i32
    return
  }
  func.func @transform_0(%arg0: i32, %arg1: memref<512xi32, #tpu.memory_space<smem>>) -> (i32, i32) {
    %c0_i32 = arith.constant 0 : i32
    %c0_i32_0 = arith.constant 0 : i32
    %c0_i32_1 = arith.constant 0 : i32
    return %c0_i32, %c0_i32_0 : i32, i32
  }
  func.func @transform_1(%arg0: i32, %arg1: memref<512xi32, #tpu.memory_space<smem>>) -> (i32, i32) {
    %c0_i32 = arith.constant 0 : i32
    %c0_i32_0 = arith.constant 0 : i32
    return %arg0, %c0_i32 : i32, i32
  }
}

</mosaic_0001>

<llo_original>
// kernel: voxelization_forward_padded.3
$region0: #{voxelization_forward_padded.3}
  #allocation0 [shape = 'u32[]', space=smem, size = 0x4, offset = 0x4, fixed_abs, tag = 'smem constant byte address 0x4 - core index']
  #allocation1 [shape = 'u32[144,128]{1,0:T(1,128)}', space=vmem, size = 0x12000, scoped, tag = 'internal scratch']
  %s0 = inlined_call_operand.vmem [shape: f32[4,256], index: 0, kind: input, shape index: {}]
  %s1 = inlined_call_operand.vmem [shape: s32[1,256], index: 1, kind: output, shape index: {}]
  %s2 = sld [smem:[#allocation0]]
  $region14: #{voxelization_forward_padded.3} parent=0
    _
  %s4 = ssub.s32 1, %s2
  %s5 = scalar_select 0, %s4, %s2
  // Predicated region
  $region2: #{voxelization_forward_padded.3} parent=0 // pred_check
    _
  $region3: #{voxelization_forward_padded.3} parent=0 // pred_check_branch
    %7 = sbr.rel (0) target = $region5
  $region4: #{voxelization_forward_padded.3} parent=0 // pred_region
    _
  $region5: #{voxelization_forward_padded.3} parent=0 // pred_fallthru
    _
  %v8 = vld [vmem:[%s0] ss:$4 sm:$0x3]
  %s9 = scalar_lea.vmem %s0, 1
  %v10 = vld [vmem:[%s9] ss:$4 sm:$0x3]
  %s11 = scalar_lea.vmem %s0, 2
  %v12 = vld [vmem:[%s11] ss:$4 sm:$0x3]
  %v13 = vmul.f32 %v8, 4.0
  %v14 = vfloor.f32 %v13
  %v15 = vcvt.f32.s32.to.zero.pseudo %v14
  %v16 = vsub.f32 %v10, -2.0
  %v17 = vmul.f32 %v16, 4.0
  %v18 = vfloor.f32 %v17
  %v19 = vcvt.f32.s32.to.zero.pseudo %v18
  %v20 = vsub.f32 %v12, -3.0
  %v21 = vmul.f32 %v20, 0.125
  %v22 = vfloor.f32 %v21
  %v23 = vcvt.f32.s32.to.zero.pseudo %v22
  %vm24 = vcmp.ge.s32.totalorder %v15, 0
  %vm25 = vcmp.lt.s32.totalorder %v15, 16
  %vm26 = vmand %vm24, %vm25
  %vm27 = vcmp.ge.s32.totalorder %v19, 0
  %vm28 = vmand %vm26, %vm27
  %vm29 = vcmp.lt.s32.totalorder %v19, 16
  %vm30 = vmand %vm28, %vm29
  %vm31 = vcmp.ge.s32.totalorder %v23, 0
  %vm32 = vmand %vm30, %vm31
  %vm33 = vcmp.lt.s32.totalorder %v23, 1
  %vm34 = vmand %vm32, %vm33
  %v35 = vmul.u32 %v23, 256
  %v36 = vmul.u32 %v19, 16
  %v37 = vadd.s32 %v35, %v36
  %v38 = vadd.s32 %v37, %v15
  %v39 = vsel %vm34, %v38, 4294967295
  %v40 = vlaneseq
  %vm41 = vcmp.ge.s32.totalorder %v40, 0
  %vm42 = vcmp.lt.s32.totalorder %v40, 256
  %vm43 = vmand %vm41, %vm42
  %44 = vst.msk [vmem:[%s1] sm:$0x3] %vm43, %v39
  // Predicated region
  $region6: #{voxelization_forward_padded.3} parent=0 // pred_check
    _
  $region7: #{voxelization_forward_padded.3} parent=0 // pred_check_branch
    %46 = sbr.rel (0) target = $region9
  $region8: #{voxelization_forward_padded.3} parent=0 // pred_region
    _
  $region9: #{voxelization_forward_padded.3} parent=0 // pred_fallthru
    _
  // Predicated region
  $region10: #{voxelization_forward_padded.3} parent=0 // pred_check
    _
  $region11: #{voxelization_forward_padded.3} parent=0 // pred_check_branch
    %48 = sbr.rel (0) target = $region13
  $region12: #{voxelization_forward_padded.3} parent=0 // pred_region
    _
  $region13: #{voxelization_forward_padded.3} parent=0 // pred_fallthru
    _

// kernel: voxelization_forward_padded.4
$region0: #{voxelization_forward_padded.4}
  #allocation0 [shape = 'u32[]', space=smem, size = 0x4, offset = 0x4, fixed_abs, tag = 'smem constant byte address 0x4 - core index']
  #allocation1 [shape = 'u32[144,128]{1,0:T(1,128)}', space=vmem, size = 0x12000, scoped, tag = 'internal scratch']
  %s0 = inlined_call_operand.vmem [shape: s32[1,256], index: 0, kind: input, shape index: {}]
  %s1 = inlined_call_operand.vmem [shape: s32[256,1], index: 1, kind: input, shape index: {}]
  %s2 = inlined_call_operand.vmem [shape: s32[1,256], index: 2, kind: output, shape index: {0}]
  %s3 = inlined_call_operand.vmem [shape: s32[1,256], index: 3, kind: output, shape index: {1}]
  %4 = xla_tuple %s2, %s3
  %s5 = sld [smem:[#allocation0]]
  $region33: #{voxelization_forward_padded.4} parent=0
    _
  %s7 = ssub.s32 1, %s5
  %s8 = scalar_select 0, %s7, %s5
  // Predicated region
  $region2: #{voxelization_forward_padded.4} parent=0 // pred_check
    _
  $region3: #{voxelization_forward_padded.4} parent=0 // pred_check_branch
    %10 = sbr.rel (0) target = $region5
  $region4: #{voxelization_forward_padded.4} parent=0 // pred_region
    _
  $region5: #{voxelization_forward_padded.4} parent=0 // pred_fallthru
    _
  // Predicated region
  $region6: #{voxelization_forward_padded.4} parent=0 // pred_check
    _
  $region7: #{voxelization_forward_padded.4} parent=0 // pred_check_branch
    %12 = sbr.rel (0) target = $region9
  $region8: #{voxelization_forward_padded.4} parent=0 // pred_region
    _
  $region9: #{voxelization_forward_padded.4} parent=0 // pred_fallthru
    _
  %v13 = vld [vmem:[%s0] sm:$0x3]
  %v14 = vlaneseq
  %v15 = vand.u32 %v14, 127
  %v16 = vadd.s32 %v15, 128
  %s17 = smul.u32 0, 256
  %v18 = vstv %s17
  %v19 = vadd.s32 %v15, %v18
  %v20 = vadd.s32 %v16, %v18
  %v21 = vlaneseq
  %vm22 = vcmp.ge.s32.totalorder %v21, 0
  %vm23 = vcmp.lt.s32.totalorder %v21, 256
  %vm24 = vmand %vm22, %vm23
  %25 = vst.msk [vmem:[%s2] sm:$0x3] %vm24, 256
  %26 = vst.msk [vmem:[%s3] sm:$0x3] %vm24, 0
  %s27 = sadd.s32 0, 1
  %s28 = smul.u32 %s27, 16
  // While loop
  $region10: #{voxelization_forward_padded.4} parent=0 // loop_pre_header
    _
  $region11: #{voxelization_forward_padded.4} parent=0 // loop_header
    %s30 = sphi 0, %s32
    %p31 = scmp.ge.s32.totalorder %s30, %s28
  $region12: #{voxelization_forward_padded.4} parent=0 // loop_header_branch
    %34 = sbr.rel (%p31) target = $region16
  $region13: #{voxelization_forward_padded.4} parent=0 // loop_body
    %s35 = smul.u32 %s30, 16
    %s36 = scalar_lea.vmem %s1, %s35
    %v37 = vld [vmem:[%s36] sm:$0xff]
    %v38 = vld [vmem:[%s36 + $0x8] sm:$0xff]
    %v39 = vlaneseq
    %v40 = vshrl.u32 %v39, 7
    %v41 = vadd.s32 %v40, 8
    %v42 = vstv %s35
    %v43 = vadd.s32 %v40, %v42
    %v44 = vadd.s32 %v41, %v42
    %45 = vset.pattern.permute.xlu0 0
    %46 = vperm.xlu0 %45, %v37
    %v47 = vpop.permute.xlu0 %46
    %48 = vset.pattern.permute.xlu0 0
    %49 = vperm.xlu0 %48, %v38
    %v50 = vpop.permute.xlu0 %49
    %v51 = vlaneseq
    %v52 = vshrl.u32 %v51, 7
    %v53 = vsub.s32 0, %v52
    %v54 = vrot.slane %v13, %v53
    %v55 = vlaneseq
    %v56 = vshrl.u32 %v55, 7
    %v57 = vsub.s32 1, %v56
    %v58 = vrot.slane %v13, %v57
    %vm59 = vcmp.eq.s32.totalorder %v47, %v54
    %vm60 = vcmp.eq.s32.totalorder %v47, %v58
    %vm61 = vcmp.eq.s32.totalorder %v50, %v54
    %vm62 = vcmp.eq.s32.totalorder %v50, %v58
    %v63 = vsel %vm59, %v43, 256
    %v64 = vsel %vm60, %v43, 256
    %v65 = vsel %vm61, %v44, 256
    %v66 = vsel %vm62, %v44, 256
    %vm67 = vcmp.lt.s32.totalorder %v63, %v65
    %v68 = vsel %vm67, %v63, %v65
    %v69 = vrot.slane %v68, 4
    %vm70 = vcmp.lt.s32.totalorder %v68, %v69
    %v71 = vsel %vm70, %v68, %v69
    %v72 = vrot.slane %v71, 2
    %vm73 = vcmp.lt.s32.totalorder %v71, %v72
    %v74 = vsel %vm73, %v71, %v72
    %v75 = vrot.slane %v74, 1
    %vm76 = vcmp.lt.s32.totalorder %v74, %v75
    %v77 = vsel %vm76, %v74, %v75
    %vm78 = vcmp.lt.s32.totalorder %v64, %v66
    %v79 = vsel %vm78, %v64, %v66
    %v80 = vrot.slane %v79, 4
    %vm81 = vcmp.lt.s32.totalorder %v79, %v80
    %v82 = vsel %vm81, %v79, %v80
    %v83 = vrot.slane %v82, 2
    %vm84 = vcmp.lt.s32.totalorder %v82, %v83
    %v85 = vsel %vm84, %v82, %v83
    %v86 = vrot.slane %v85, 1
    %vm87 = vcmp.lt.s32.totalorder %v85, %v86
    %v88 = vsel %vm87, %v85, %v86
    %v89 = vld [vmem:[%s2] sm:$0x3]
    %v90 = vcombine.low %v77, %v88
    %v92 = vunpack.c.l.s4 1966171168
    %v93 = vunpack.c.0.s8 %v92
    %v94 = vlaneseq
    %v95 = vshrl.u32 %v94, 7
    %v96 = vsub.s32 %v93, %v95
    %v97 = vrot.slane %v90, %v96
    %v99 = vunpack.c.l.s4 1966171168
    %v100 = vunpack.c.0.s8 %v99
    %v101 = vlaneseq
    %v102 = vshrl.u32 %v101, 7
    %v103 = vsub.s32 %v100, %v102
    %v104 = vrot.slane %v97, %v103
    %vm105 = vcmp.lt.s32.totalorder %v89, %v104
    %v106 = vsel %vm105, %v89, %v104
    %107 = vst.msk [vmem:[%s2] sm:$0x3] %vm24, %v106
    %vm108 = vcmp.lt.s32.totalorder %v43, %v19
    %vm109 = vcmp.lt.s32.totalorder %v43, %v20
    %vm110 = vcmp.lt.s32.totalorder %v44, %v19
    %vm111 = vcmp.lt.s32.totalorder %v44, %v20
    %vm112 = vmand %vm59, %vm108
    %vm113 = vmand %vm60, %vm109
    %vm114 = vmand %vm61, %vm110
    %vm115 = vmand %vm62, %vm111
    %v116 = vsel %vm112, 1, 0
    %v117 = vsel %vm113, 1, 0
    %v118 = vsel %vm114, 1, 0
    %v119 = vsel %vm115, 1, 0
    %v120 = vadd.s32 %v116, %v118
    %v121 = vrot.slane %v120, 4
    %v122 = vadd.s32 %v120, %v121
    %v123 = vrot.slane %v122, 2
    %v124 = vadd.s32 %v122, %v123
    %v125 = vrot.slane %v124, 1
    %v126 = vadd.s32 %v124, %v125
    %v127 = vadd.s32 %v117, %v119
    %v128 = vrot.slane %v127, 4
    %v129 = vadd.s32 %v127, %v128
    %v130 = vrot.slane %v129, 2
    %v131 = vadd.s32 %v129, %v130
    %v132 = vrot.slane %v131, 1
    %v133 = vadd.s32 %v131, %v132
    %v134 = vld [vmem:[%s3] sm:$0x3]
    %v135 = vcombine.low %v126, %v133
    %v137 = vunpack.c.l.s4 1966171168
    %v138 = vunpack.c.0.s8 %v137
    %v139 = vlaneseq
    %v140 = vshrl.u32 %v139, 7
    %v141 = vsub.s32 %v138, %v140
    %v142 = vrot.slane %v135, %v141
    %v144 = vunpack.c.l.s4 1966171168
    %v145 = vunpack.c.0.s8 %v144
    %v146 = vlaneseq
    %v147 = vshrl.u32 %v146, 7
    %v148 = vsub.s32 %v145, %v147
    %v149 = vrot.slane %v142, %v148
    %v150 = vadd.s32 %v134, %v149
    %151 = vst.msk [vmem:[%s3] sm:$0x3] %vm24, %v150
  $region14: #{voxelization_forward_padded.4} parent=0 // loop_footer
    %s32 = sadd.s32 %s30, 1
  $region15: #{voxelization_forward_padded.4} parent=0 // loop_footer_branch
    %29 = sbr.rel target = $region11
  $region16: #{voxelization_forward_padded.4} parent=0 // loop_exit
    _
  // Predicated region
  $region17: #{voxelization_forward_padded.4} parent=0 // pred_check
    _
  $region18: #{voxelization_forward_padded.4} parent=0 // pred_check_branch
    %153 = sbr.rel (0) target = $region20
  $region19: #{voxelization_forward_padded.4} parent=0 // pred_region
    _
  $region20: #{voxelization_forward_padded.4} parent=0 // pred_fallthru
    _
  // Predicated region
  $region21: #{voxelization_forward_padded.4} parent=0 // pred_check
    _
  $region22: #{voxelization_forward_padded.4} parent=0 // pred_check_branch
    %155 = sbr.rel (0) target = $region24
  $region23: #{voxelization_forward_padded.4} parent=0 // pred_region
    _
  $region24: #{voxelization_forward_padded.4} parent=0 // pred_fallthru
    _
  // Predicated region
  $region25: #{voxelization_forward_padded.4} parent=0 // pred_check
    _
  $region26: #{voxelization_forward_padded.4} parent=0 // pred_check_branch
    %157 = sbr.rel (0) target = $region28
  $region27: #{voxelization_forward_padded.4} parent=0 // pred_region
    _
  $region28: #{voxelization_forward_padded.4} parent=0 // pred_fallthru
    _
  // Predicated region
  $region29: #{voxelization_forward_padded.4} parent=0 // pred_check
    _
  $region30: #{voxelization_forward_padded.4} parent=0 // pred_check_branch
    %159 = sbr.rel (0) target = $region32
  $region31: #{voxelization_forward_padded.4} parent=0 // pred_region
    _
  $region32: #{voxelization_forward_padded.4} parent=0 // pred_fallthru
    _

// kernel: voxelization_forward_padded.5
$region0: #{voxelization_forward_padded.5}
  #allocation0 [shape = 'u32[]', space=smem, size = 0x4, offset = 0x4, fixed_abs, tag = 'smem constant byte address 0x4 - core index']
  #allocation1 [shape = 'u32[144,128]{1,0:T(1,128)}', space=vmem, size = 0x12000, scoped, tag = 'internal scratch']
  #allocation2 [shape = 's32[1]{0}', space=sflag, size = 0x4, scoped, tag = 'scoped memory for voxelization_forward_padded.5']
  #allocation3 [shape = 'u8[2048]{0}', space=smem, size = 0x800, scoped, tag = 'prefetched SMEM operand 0']
  %s0 = inlined_call_operand.vmem [shape: s32[512], index: 0, kind: input, shape index: {}]
  %s1 = inlined_call_operand.vmem [shape: f32[256,4], index: 1, kind: input, shape index: {}]
  %s2 = inlined_call_operand.vmem [shape: f32[512,4], index: 2, kind: output, shape index: {}]
  %s3 = sld [smem:[#allocation0]]
  $region44: #{voxelization_forward_padded.5} parent=0
    _
  %s5 = ssub.s32 1, %s3
  %s6 = scalar_select 0, %s5, %s3
  %s7 = sshll.u32 %s0, 4
  %s8 = int_to_ptr.vmem [resolvable:$true] %s7
  %10 = dma.vmem_to_smem %s8, 64, [#allocation3], [#allocation2]
  %11 = dma.done [#allocation2], 64
  %12 = sfence
  loop: start=0, step=1, limit=6
  $region2: #{voxelization_forward_padded.5} parent=0 // loop_pre_header
    _
  $region3: #{voxelization_forward_padded.5} parent=0 // loop_header
    %s14 = sphi 0, %s18
    %p15 = scmp.ge.s32.totalorder %s14, 6
    %s22 = sphi 0, %s22
    %s24 = sphi 0, %s22
    %s25 = sphi 0, %s24
    %s39 = sphi 0, %s25
    %s45 = sphi 0, %s47
    %s48 = sphi 0, %s45
    %s49 = sphi 0, %s48
    %s65 = sphi 0, %s49
  $region4: #{voxelization_forward_padded.5} parent=0 // loop_header_branch
    %17 = sbr.rel (%p15) target = $region8
  $region5: #{voxelization_forward_padded.5} parent=0 // loop_body
    %s19 = ssub.s32 %s14, 1
    %s20 = ssub.s32 %s14, 2
    %s21 = sadd.s32 %s14, 1
    %s23 = sadd.s32 %s22, 1
    %p26 = scmp.eq.s32.totalorder %s14, 3
    %p27 = scmp.ne.s32.totalorder %s22, %s24
    %p28 = scmp.eq.s32.totalorder %s14, 0
    %p29 = por %p27, %p28
    %p30 = scmp.ne.s32.totalorder %s22, %s24
    %p31 = scmp.eq.s32.totalorder %s19, 3
    %p32 = por %p30, %p31
    %p33 = scmp.ne.s32.totalorder %s24, %s25
    %p34 = scmp.eq.s32.totalorder %s19, 0
    %p35 = por %p33, %p34
    %p36 = scmp.ne.s32.totalorder %s24, %s25
    %p37 = scmp.eq.s32.totalorder %s20, 3
    %p38 = por %p36, %p37
    %p40 = scmp.ne.s32.totalorder %s25, %s39
    %p41 = scmp.eq.s32.totalorder %s20, 0
    %p42 = por %p40, %p41
    %s43 = ssub.s32 %s14, %s21
    %p44 = scmp.eq.s32.totalorder %s43, 0
    %s46 = sadd.s32 %s45, 1
    %s47 = scalar_select %p44, %s45, %s46
    %p50 = pneg %p44
    %p51 = scmp.eq.s32.totalorder %s14, 3
    %p52 = por %p50, %p51
    %p53 = scmp.ne.s32.totalorder %s45, %s48
    %p54 = scmp.eq.s32.totalorder %s14, 0
    %p55 = por %p53, %p54
    %p56 = scmp.ne.s32.totalorder %s45, %s48
    %p57 = scmp.eq.s32.totalorder %s19, 3
    %p58 = por %p56, %p57
    %p59 = scmp.ne.s32.totalorder %s48, %s49
    %p60 = scmp.eq.s32.totalorder %s19, 0
    %p61 = por %p59, %p60
    %p62 = scmp.ne.s32.totalorder %s48, %s49
    %p63 = scmp.eq.s32.totalorder %s20, 3
    %p64 = por %p62, %p63
    %p66 = scmp.ne.s32.totalorder %s49, %s65
    %p67 = scmp.eq.s32.totalorder %s20, 0
    %p68 = por %p66, %p67
    %p69 = scmp.le.s32.totalorder 1, %s14
    %p70 = scmp.lt.s32.totalorder %s14, 5
    %p71 = pnand %p69, %p70
    %p72 = pneg %p71
    // Predicated region
    $region9: #{voxelization_forward_padded.5} parent=5 // pred_check
      _
    $region10: #{voxelization_forward_padded.5} parent=5 // pred_check_branch
      %74 = sbr.rel (%p71) target = $region12
    $region11: #{voxelization_forward_padded.5} parent=5 // pred_region
      %s75 = ssub.s32 %s14, 1
      // Predicated region
      $region13: #{voxelization_forward_padded.5} parent=11 // pred_check
        %p76 = pneg %p35
      $region14: #{voxelization_forward_padded.5} parent=11 // pred_check_branch
        %78 = sbr.rel (%p76) target = $region16
      $region15: #{voxelization_forward_padded.5} parent=11 // pred_region
        _
      $region16: #{voxelization_forward_padded.5} parent=11 // pred_fallthru
        _
    $region12: #{voxelization_forward_padded.5} parent=5 // pred_fallthru
      _
    %p79 = scmp.lt.s32.totalorder %s14, 4
    // Predicated region
    $region17: #{voxelization_forward_padded.5} parent=5 // pred_check
      %p80 = pneg %p79
    $region18: #{voxelization_forward_padded.5} parent=5 // pred_check_branch
      %82 = sbr.rel (%p80) target = $region20
    $region19: #{voxelization_forward_padded.5} parent=5 // pred_region
      _
    $region20: #{voxelization_forward_padded.5} parent=5 // pred_fallthru
      _
    %p83 = scmp.le.s32.totalorder 1, %s14
    %p84 = scmp.lt.s32.totalorder %s14, 5
    %p85 = pnand %p83, %p84
    %p86 = pneg %p85
    // Predicated region
    $region21: #{voxelization_forward_padded.5} parent=5 // pred_check
      _
    $region22: #{voxelization_forward_padded.5} parent=5 // pred_check_branch
      %88 = sbr.rel (%p85) target = $region24
    $region23: #{voxelization_forward_padded.5} parent=5 // pred_region
      %s89 = ssub.s32 %s14, 1
      %p90 = pneg %p35
      %p91 = pneg %p32
      %p92 = pneg %p61
      %p93 = pneg %p58
      %s94 = smul.u32 16, %s19
      %p95 = scmp.lt.s32.totalorder %s94, 63
      %s96 = scalar_select %p95, %s94, 63
      %s97 = smul.addr %s96, 8
      %s98 = scalar_lea.vmem %s2, %s97
      %s99 = smul.u32 16, %s19
      %p100 = scmp.lt.s32.totalorder %s99, 63
      %s101 = scalar_select %p100, %s99, 63
      %s102 = smul.addr %s101, 8
      %s103 = scalar_lea.vmem %s2, %s102
      %s104 = smul.u32 16, %s19
      %s105 = smul.u32 %s19, 128
      loop: start=0, step=1, limit=128
      $region25: #{voxelization_forward_padded.5} parent=23 // loop_pre_header
        _
      $region26: #{voxelization_forward_padded.5} parent=23 // loop_header
        %s107 = sphi 0, %s111
        %p108 = scmp.ge.s32.totalorder %s107, 128
      $region27: #{voxelization_forward_padded.5} parent=23 // loop_header_branch
        %110 = sbr.rel (%p108) target = $region31
      $region28: #{voxelization_forward_padded.5} parent=23 // loop_body
        %s112 = sadd.s32 %s105, %s107
        %s113 = sld [smem:[#allocation3 + %s112]]
        %p114 = scmp.lt.s32.totalorder %s113, 256
        %s115 = scalar_select %p114, %s113, 0
        %s116 = scalar_lea.vmem %s1, %s115
        %v117 = vld [vmem:[%s116] sm:$0x1]
        %s118 = scalar_select %p114, 1, 0
        %v119 = vstv %s118
        %vm120 = vcmp.eq.s32.totalorder %v119, 1
        %v121 = vsel %vm120, %v117, 0.0
        %s122 = scalar_lea.vmem %s103, %s107
        %vm123 = vcmask 24576
        %124 = vst.msk [vmem:[%s122] sm:$0x1] %vm123, %v121
      $region29: #{voxelization_forward_padded.5} parent=23 // loop_footer
        %s111 = sadd.s32 1, %s107
      $region30: #{voxelization_forward_padded.5} parent=23 // loop_footer_branch
        %106 = sbr.rel target = $region26
      $region31: #{voxelization_forward_padded.5} parent=23 // loop_exit
        _
      %s125 = smul.u32 16, %s19
      %p126 = scmp.lt.s32.totalorder %s125, 63
      %s127 = scalar_select %p126, %s125, 63
      %s128 = smul.addr %s127, 8
      %s129 = scalar_lea.vmem %s2, %s128
      // Predicated region
      $region32: #{voxelization_forward_padded.5} parent=23 // pred_check
        %p130 = pneg %p58
      $region33: #{voxelization_forward_padded.5} parent=23 // pred_check_branch
        %132 = sbr.rel (%p130) target = $region35
      $region34: #{voxelization_forward_padded.5} parent=23 // pred_region
        %s133 = smul.u32 16, %s19
      $region35: #{voxelization_forward_padded.5} parent=23 // pred_fallthru
        _
    $region24: #{voxelization_forward_padded.5} parent=5 // pred_fallthru
      _
    %p134 = scmp.le.s32.totalorder 2, %s14
    // Predicated region
    $region36: #{voxelization_forward_padded.5} parent=5 // pred_check
      %p135 = pneg %p134
    $region37: #{voxelization_forward_padded.5} parent=5 // pred_check_branch
      %137 = sbr.rel (%p135) target = $region39
    $region38: #{voxelization_forward_padded.5} parent=5 // pred_region
      %s138 = ssub.s32 %s14, 2
      // Predicated region
      $region40: #{voxelization_forward_padded.5} parent=38 // pred_check
        %p139 = pneg %p64
      $region41: #{voxelization_forward_padded.5} parent=38 // pred_check_branch
        %141 = sbr.rel (%p139) target = $region43
      $region42: #{voxelization_forward_padded.5} parent=38 // pred_region
        %s142 = smul.u32 16, %s20
        %p143 = scmp.lt.s32.totalorder %s142, 63
        %s144 = scalar_select %p143, %s142, 63
        %s145 = smul.addr %s144, 8
        %s146 = scalar_lea.vmem %s2, %s145
      $region43: #{voxelization_forward_padded.5} parent=38 // pred_fallthru
        _
    $region39: #{voxelization_forward_padded.5} parent=5 // pred_fallthru
      _
  $region6: #{voxelization_forward_padded.5} parent=0 // loop_footer
    %s18 = sadd.s32 1, %s14
  $region7: #{voxelization_forward_padded.5} parent=0 // loop_footer_branch
    %13 = sbr.rel target = $region3
  $region8: #{voxelization_forward_padded.5} parent=0 // loop_exit
    _

</llo_original>
